<compile_context>
chip_gen: v6e
topology: v6e:2x2x1
jax: 0.10.0
libtpu: 0.0.40
codegen_flags: <defaults>
</compile_context>

<pallas_src>
import jax
import jax.numpy as jnp
from jax.experimental import pallas as pl
from jax.experimental.pallas import tpu as pltpu


def _op_dtype(dtype):
    # Keep bf16 operands native for full MXU throughput; everything else f32.
    return jnp.bfloat16 if dtype == jnp.bfloat16 else jnp.float32


def _round_up(x, m):
    return -(-int(x) // m) * m


def _pad_tile_bytes(sub, lane, itemsize):
    # Approximate VMEM occupancy of a 2-D tile after (8, 128) layout padding.
    return _round_up(max(int(sub), 1), 8) * _round_up(max(int(lane), 1), 128) * int(itemsize)


def _vmem_capacity_bytes():
    try:
        return int(pltpu.get_tpu_info().vmem_capacity_bytes)
    except Exception:
        return 64 << 20  # v7x per-core physical VMEM; conservative floor everywhere.


def _compiler_params(dim_sem, footprint_bytes):
    kw = dict(dimension_semantics=dim_sem)
    # Only touch the scoped-VMEM limit when the tiles actually need it, and cap
    # it by the physical per-core capacity (v7x: 64 MiB) rather than a fixed
    # number that only makes sense on v5e/v6e.
    if footprint_bytes > (8 << 20):
        cap = int(0.85 * _vmem_capacity_bytes())
        want = footprint_bytes * 3 // 2 + (4 << 20)
        kw["vmem_limit_bytes"] = int(min(max(want, 32 << 20), cap))
    return pltpu.CompilerParams(**kw)


# ----------------------- cov path:  (B, d, N) -> (B, N, N) -------------------
def _cov_pallas(x, remove_mean, out_dtype=None, force_d_block=None):
    B, d, N = x.shape
    inv_n = 1.0 / float(N)
    out_dtype = x.dtype if out_dtype is None else out_dtype
    op_dtype = _op_dtype(x.dtype)
    itemsize = jnp.dtype(op_dtype).itemsize
    out_itemsize = jnp.dtype(out_dtype).itemsize

    # Centering hoisted out of the kernel and fused with the transpose pass.
    # Extra HBM traffic is only ~2*d*N per batch, negligible vs the N^2 output,
    # and it removes the per-grid-step VPU subtract/cast entirely.
    xf = x.astype(jnp.float32)
    if remove_mean:
        xf = xf - jnp.mean(xf, axis=(1, 2), keepdims=True)
    xc = xf.astype(op_dtype)                      # (B, d, N)  RHS, natural layout
    xt = jnp.swapaxes(xf, 1, 2).astype(op_dtype)  # (B, N, d)  LHS, pre-transposed

    # Output tile: the biggest lane-dense multiple of 128 that divides N.
    if N % 512 == 0:
        tn = 512
    elif N % 256 == 0:
        tn = 256
    elif N % 128 == 0:
        tn = 128
    else:
        tn = N  # whole-slab fallback for small unaligned N (see TODO above).
    nt = N // tn

    # Contraction (d) tile: keep double-buffered, padded operand tiles under a
    # v7x-safe budget; only introduce a reduction axis when full d won't fit.
    op_budget = 16 << 20

    def op_footprint(tkd):
        return 2 * (_pad_tile_bytes(tn, tkd, itemsize) +
                    _pad_tile_bytes(tkd, tn, itemsize))

    if force_d_block is not None:
        tkd = int(force_d_block)
    elif op_footprint(d) <= op_budget:
        tkd = d
    else:
        tkd = d
        for cand in (2048, 1024, 512, 256, 128):
            if d % cand == 0 and op_footprint(cand) <= op_budget:
                tkd = cand
                break
    if d % tkd != 0:
        tkd = d
    nkd = d // tkd
    tile_d = nkd > 1

    if not tile_d:
        # Pure MXU tile: one dot + scale per output tile.
        def cov_kernel(xt_ref, xc_ref, o_ref):
            o_ref[0] = (jnp.dot(xt_ref[0], xc_ref[0],
                                preferred_element_type=jnp.float32)
                        * inv_n).astype(o_ref.dtype)

        grid_spec = pltpu.PrefetchScalarGridSpec(
            num_scalar_prefetch=0,
            grid=(B, nt, nt),   # j fastest: the LHS block stays resident across j
            in_specs=[
                pl.BlockSpec((1, tn, d), lambda b, i, j: (b, i, 0)),
                pl.BlockSpec((1, d, tn), lambda b, i, j: (b, 0, j)),
            ],
            out_specs=pl.BlockSpec((1, tn, tn), lambda b, i, j: (b, i, j)),
        )
        dim_sem = ("parallel", "parallel", "parallel")
        scratch_bytes = 0
    else:
        # Large d: tile the contraction axis with an f32 VMEM accumulator.
        def cov_kernel(xt_ref, xc_ref, o_ref, acc_ref):
            kd = pl.program_id(3)

            @pl.when(kd == 0)
            def _():
                acc_ref[...] = jnp.zeros_like(acc_ref)

            acc_ref[...] += jnp.dot(xt_ref[0], xc_ref[0],
                                    preferred_element_type=jnp.float32)

            @pl.when(kd == pl.num_programs(3) - 1)
            def _():
                o_ref[0] = (acc_ref[...] * inv_n).astype(o_ref.dtype)

        grid_spec = pltpu.PrefetchScalarGridSpec(
            num_scalar_prefetch=0,
            grid=(B, nt, nt, nkd),   # reduction axis last
            in_specs=[
                pl.BlockSpec((1, tn, tkd), lambda b, i, j, kd: (b, i, kd)),
                pl.BlockSpec((1, tkd, tn), lambda b, i, j, kd: (b, kd, j)),
            ],
            out_specs=pl.BlockSpec((1, tn, tn), lambda b, i, j, kd: (b, i, j)),
            scratch_shapes=[pltpu.VMEM((tn, tn), jnp.float32)],
        )
        dim_sem = ("parallel", "parallel", "parallel", "arbitrary")
        scratch_bytes = tn * tn * 4

    footprint = (op_footprint(tkd)
                 + 2 * _pad_tile_bytes(tn, tn, out_itemsize)
                 + scratch_bytes)

    return pl.pallas_call(
        cov_kernel,
        out_shape=jax.ShapeDtypeStruct((B, N, N), out_dtype),
        grid_spec=grid_spec,
        compiler_params=_compiler_params(dim_sem, footprint),
        cost_estimate=pl.CostEstimate(
            flops=2 * B * d * N * N,
            transcendentals=0,
            # LHS panels read once per batch; RHS panels re-read per output row-tile.
            bytes_accessed=int(B * ((1 + nt) * N * d * itemsize
                                    + N * N * out_itemsize))),
    )(xt, xc)


# ---------------- cross-cov path: (B,N,d1),(B,N,d2) -> (B,d1,d2) -------------
def _cross_cov_pallas(x1, x2, remove_mean, out_dtype=None, force_n_block=None):
    B1, N1, d1 = x1.shape
    B2, N2, d2 = x2.shape
    assert B1 == B2 and N1 == N2
    B, N = B1, N1
    inv_n = 1.0 / float(N)
    out_dtype = x1.dtype if out_dtype is None else out_dtype
    op_dtype = _op_dtype(x1.dtype)
    in_itemsize = jnp.dtype(x1.dtype).itemsize
    out_itemsize = jnp.dtype(out_dtype).itemsize

    # Per-batch scalar means via scalar prefetch (SMEM).  Centering stays in
    # the kernel: hoisting it would require materializing centered copies in
    # HBM, doubling the reads of a read-bandwidth-bound kernel.
    if remove_mean:
        m1 = jnp.mean(x1.astype(jnp.float32), axis=(1, 2))
        m2 = jnp.mean(x2.astype(jnp.float32), axis=(1, 2))
    else:
        m1 = jnp.zeros((B,), jnp.float32)
        m2 = jnp.zeros((B,), jnp.float32)

    # LHS pre-transposed once in the wrapper so the kernel does a plain
    # [d1, tk] x [tk, d2] MXU matmul with a lane-dense contraction dim.
    x1t = jnp.swapaxes(x1, 1, 2)   # (B, d1, N)

    # Contraction tile: target MiB-scale per-step DMAs (grid overhead amortized)
    # while the *padded* (tk, d2) tile (d2 < 128 pads to 128 lanes) stays within
    # a v7x-safe double-buffered budget.
    in_budget = 12 << 20

    def in_footprint(tk):
        return 2 * (_pad_tile_bytes(d1, tk, in_itemsize) +
                    _pad_tile_bytes(tk, d2, in_itemsize))

    if force_n_block is not None and N % int(force_n_block) == 0:
        tk = int(force_n_block)
    elif in_footprint(N) <= in_budget:
        tk = N
    else:
        tk = N
        for cand in (16384, 8192, 4096, 2048, 1024, 512, 256, 128):
            if N % cand == 0 and in_footprint(cand) <= in_budget:
                tk = cand
                break
        # Large N with no 128-multiple divisor keeps tk = N (see TODO above).
    nk = N // tk

    def xcov_kernel(m1_ref, m2_ref, x1t_ref, x2_ref, o_ref, acc_ref):
        b = pl.program_id(0)
        k = pl.program_id(1)

        @pl.when(k == 0)
        def _():
            acc_ref[...] = jnp.zeros_like(acc_ref)

        lhs = x1t_ref[0]                 # (d1, tk)  lane-dense contraction dim
        rhs = x2_ref[0]                  # (tk, d2)
        if remove_mean:
            lhs = (lhs.astype(jnp.float32) - m1_ref[b]).astype(op_dtype)
            rhs = (rhs.astype(jnp.float32) - m2_ref[b]).astype(op_dtype)
        else:
            lhs = lhs.astype(op_dtype)
            rhs = rhs.astype(op_dtype)
        acc_ref[...] += jnp.dot(lhs, rhs, preferred_element_type=jnp.float32)

        @pl.when(k == pl.num_programs(1) - 1)
        def _():
            o_ref[0] = (acc_ref[...] * inv_n).astype(o_ref.dtype)

    footprint = (in_footprint(tk)
                 + 2 * _pad_tile_bytes(d1, d2, out_itemsize)
                 + _pad_tile_bytes(d1, d2, 4))

    grid_spec = pltpu.PrefetchScalarGridSpec(
        num_scalar_prefetch=2,
        grid=(B, nk),
        in_specs=[
            pl.BlockSpec((1, d1, tk), lambda b, k, m1, m2: (b, 0, k)),
            pl.BlockSpec((1, tk, d2), lambda b, k, m1, m2: (b, k, 0)),
        ],
        out_specs=pl.BlockSpec((1, d1, d2), lambda b, k, m1, m2: (b, 0, 0)),
        scratch_shapes=[pltpu.VMEM((d1, d2), jnp.float32)],
    )

    return pl.pallas_call(
        xcov_kernel,
        out_shape=jax.ShapeDtypeStruct((B, d1, d2), out_dtype),
        grid_spec=grid_spec,
        compiler_params=_compiler_params(("parallel", "arbitrary"), footprint),
        cost_estimate=pl.CostEstimate(
            flops=2 * B * N * d1 * d2,
            transcendentals=0,
            bytes_accessed=int(B * ((N * d1 + N * d2) * in_itemsize
                                    + d1 * d2 * out_itemsize))),
    )(m1, m2, x1t, x2)


def covariance_forward(x, y=None, remove_mean=True, out_dtype=None):
    """Pallas implementation of Covariance.forward (conv=False path)."""
    if y is None:
        return _cov_pallas(x, remove_mean, out_dtype=out_dtype)
    return _cross_cov_pallas(x, y, remove_mean, out_dtype=out_dtype)


# ---- pure-JAX references (mirror the PyTorch code, computed in f32) ---------
def _ref_cov(x, remove_mean=True):
    xf = x.astype(jnp.float32)
    if remove_mean:
        xf = xf - jnp.mean(xf, axis=(1, 2), keepdims=True)
    return jnp.einsum("bdn,bdm->bnm", xf, xf) / x.shape[-1]


def _ref_cross_cov(x, y, remove_mean=True):
    xf = x.astype(jnp.float32)
    yf = y.astype(jnp.float32)
    if remove_mean:
        xf = xf - jnp.mean(xf, axis=(1, 2), keepdims=True)
        yf = yf - jnp.mean(yf, axis=(1, 2), keepdims=True)
    return jnp.einsum("bni,bnj->bij", xf, yf) / x.shape[1]


if __name__ == "__main__":
    key = jax.random.PRNGKey(0)
    keys = jax.random.split(key, 8)

    # 1) cov path, small unaligned N (single-slab fallback): x is (B, d, N).
    B, d, N = 2, 8, 32
    x = jax.random.normal(keys[0], (B, d, N), dtype=jnp.float32)
    out = jax.block_until_ready(covariance_forward(x))
    assert out.shape == (B, N, N)
    assert jnp.allclose(out, _ref_cov(x), atol=1e-5, rtol=1e-5)

    # 2) cov path, tiled output (N=384 -> tn=128, 3x3 output-tile grid / batch).
    xb = jax.random.normal(keys[1], (2, 16, 384), dtype=jnp.float32)
    outb = jax.block_until_ready(covariance_forward(xb))
    assert outb.shape == (2, 384, 384)
    assert jnp.allclose(outb, _ref_cov(xb), atol=1e-4, rtol=1e-4)

    # 3) cov path, large output tile (N=512 -> tn=512).
    xl = jax.random.normal(keys[2], (2, 16, 512), dtype=jnp.float32)
    outl = jax.block_until_ready(covariance_forward(xl))
    assert outl.shape == (2, 512, 512)
    assert jnp.allclose(outl, _ref_cov(xl), atol=1e-4, rtol=1e-4)

    # 4) cov path, bf16 operands on the MXU with f32 accumulation (loose tol;
    #    centered values are re-quantized to bf16 before the MXU by design).
    xbf = jax.random.normal(keys[3], (2, 16, 128), dtype=jnp.float32).astype(jnp.bfloat16)
    outbf = jax.block_until_ready(covariance_forward(xbf))
    assert outbf.dtype == jnp.bfloat16
    assert jnp.allclose(outbf.astype(jnp.float32), _ref_cov(xbf), atol=2e-2, rtol=2e-2)

    # 5) cov path, forced d-axis tiling -> exercises the accumulator kernel
    #    (nkd=2) that large-d inputs would take on v7x.
    xd = jax.random.normal(keys[4], (2, 256, 256), dtype=jnp.float32)
    outd = jax.block_until_ready(_cov_pallas(xd, True, force_d_block=128))
    assert outd.shape == (2, 256, 256)
    assert jnp.allclose(outd, _ref_cov(xd), atol=1e-4, rtol=1e-4)

    # 6) cov path, bf16-output knob on an f32 input (narrower N^2 store).
    outq = jax.block_until_ready(covariance_forward(xbf.astype(jnp.float32),
                                                    out_dtype=jnp.bfloat16))
    assert outq.dtype == jnp.bfloat16
    assert jnp.allclose(outq.astype(jnp.float32), _ref_cov(xbf.astype(jnp.float32)),
                        atol=1e-2, rtol=1e-2)

    # 7) cross-cov path, small shapes: x1 (B, N, d1), x2 (B, N, d2).
    d1, d2 = 8, 16
    x1 = jax.random.normal(keys[5], (B, N, d1), dtype=jnp.float32)
    x2 = jax.random.normal(keys[6], (B, N, d2), dtype=jnp.float32)
    outx = jax.block_until_ready(covariance_forward(x1, x2))
    assert outx.shape == (B, d1, d2)
    assert jnp.allclose(outx, _ref_cross_cov(x1, x2), atol=1e-5, rtol=1e-5)

    # 8) cross-cov path, forced contraction tiling -> two k chunks through the
    #    f32 VMEM accumulator (init/finalize via pl.when).
    y1 = jax.random.normal(keys[7], (2, 512, 16), dtype=jnp.float32)
    y2 = jax.random.normal(keys[0], (2, 512, 24), dtype=jnp.float32)
    outy = jax.block_until_ready(_cross_cov_pallas(y1, y2, True, force_n_block=256))
    assert outy.shape == (2, 16, 24)
    assert jnp.allclose(outy, _ref_cross_cov(y1, y2), atol=1e-4, rtol=1e-4)

    print("KERNEL_OK")
</pallas_src>

<mosaic_0001>
module attributes {stable_mosaic.version = 11 : i64} {
  func.func @cov_kernel(%arg0: i32, %arg1: i32, %arg2: i32, %arg3: memref<1x32x8xf32, #tpu.memory_space<vmem>>, %arg4: memref<1x8x32xf32, #tpu.memory_space<vmem>>, %arg5: memref<1x32x32xf32, #tpu.memory_space<vmem>>) attributes {dimension_semantics = [#tpu.dimension_semantics<parallel>, #tpu.dimension_semantics<parallel>, #tpu.dimension_semantics<parallel>], iteration_bounds = array<i64: 2, 1, 1>, scalar_prefetch = 0 : i64, scratch_operands = 0 : i64, tpu.core_type = #tpu.core_type<tc>, window_params = [{transform_indices = @transform_0, window_bounds = array<i64: 1, 32, 8>}, {transform_indices = @transform_1, window_bounds = array<i64: 1, 8, 32>}, {transform_indices = @transform_2, window_bounds = array<i64: 1, 32, 32>}]} {
    %c0 = arith.constant 0 : index
    %c0_0 = arith.constant 0 : index
    %c0_1 = arith.constant 0 : index
    %0 = vector.load %arg3[%c0, %c0_0, %c0_1] : memref<1x32x8xf32, #tpu.memory_space<vmem>>, vector<1x32x8xf32>
    %1 = vector.shape_cast %0 : vector<1x32x8xf32> to vector<32x8xf32>
    %c0_2 = arith.constant 0 : index
    %c0_3 = arith.constant 0 : index
    %c0_4 = arith.constant 0 : index
    %2 = vector.load %arg4[%c0_2, %c0_3, %c0_4] : memref<1x8x32xf32, #tpu.memory_space<vmem>>, vector<1x8x32xf32>
    %3 = vector.shape_cast %2 : vector<1x8x32xf32> to vector<8x32xf32>
    %cst = arith.constant dense<0.000000e+00> : vector<32x32xf32>
    %4 = tpu.matmul %1, %3, %cst {dimension_numbers = #tpu.dot_dimension_numbers<[1], [0], [0], [1], [0, 0, 1, 1], [], []>} : vector<32x8xf32>, vector<8x32xf32>, vector<32x32xf32> -> vector<32x32xf32>
    %cst_5 = arith.constant 3.125000e-02 : f32
    %5 = vector.broadcast %cst_5 : f32 to vector<32x32xf32>
    %6 = arith.mulf %4, %5 : vector<32x32xf32>
    %c0_6 = arith.constant 0 : index
    %c0_7 = arith.constant 0 : index
    %c0_8 = arith.constant 0 : index
    %7 = vector.load %arg5[%c0_6, %c0_7, %c0_8] : memref<1x32x32xf32, #tpu.memory_space<vmem>>, vector<1x32x32xf32>
    %8 = vector.shape_cast %7 : vector<1x32x32xf32> to vector<32x32xf32>
    %9 = vector.shape_cast %6 : vector<32x32xf32> to vector<1x32x32xf32>
    tpu.vector_store %arg5[%c0_6, %c0_7, %c0_8], %9 {strides = array<i32>} : memref<1x32x32xf32, #tpu.memory_space<vmem>>, vector<1x32x32xf32>,
    return
  }
  func.func @transform_0(%arg0: i32, %arg1: i32, %arg2: i32) -> (i32, i32, i32) {
    %c0_i32 = arith.constant 0 : i32
    %c0_i32_0 = arith.constant 0 : i32
    return %arg0, %arg1, %c0_i32 : i32, i32, i32
  }
  func.func @transform_1(%arg0: i32, %arg1: i32, %arg2: i32) -> (i32, i32, i32) {
    %c0_i32 = arith.constant 0 : i32
    %c0_i32_0 = arith.constant 0 : i32
    return %arg0, %c0_i32, %arg2 : i32, i32, i32
  }
  func.func @transform_2(%arg0: i32, %arg1: i32, %arg2: i32) -> (i32, i32, i32) {
    %c0_i32 = arith.constant 0 : i32
    return %arg0, %arg1, %arg2 : i32, i32, i32
  }
}

</mosaic_0001>

<llo_original>
// kernel: tpu_custom_call.1
$region0: #{tpu_custom_call.1}
  #allocation0 [shape = 'u32[]', space=smem, size = 0x4, offset = 0x4, fixed_abs, tag = 'smem constant byte address 0x4 - core index']
  #allocation1 [shape = 'u32[144,128]{1,0:T(1,128)}', space=vmem, size = 0x12000, scoped, tag = 'internal scratch']
  %s0 = inlined_call_operand.vmem [shape: f32[2,32,8], index: 0, kind: input, shape index: {}]
  %s1 = inlined_call_operand.vmem [shape: f32[2,8,32], index: 1, kind: input, shape index: {}]
  %s2 = inlined_call_operand.hbm [shape: f32[2,32,32], index: 2, kind: output, shape index: {}]
  %s3 = sld [smem:[#allocation0]]
  $region41: #{tpu_custom_call.1} parent=0
    _
  %s5 = ssub.s32 1, %s3
  %s6 = scalar_select 0, %s5, %s3
  $region1: #{tpu_custom_call.1} parent=0
    #allocation2 [shape = 'u8[32768]{0}', space=vmem, size = 0x8000, scoped, tag = 'output window, operand 0']
    #allocation3 [shape = 's32[2]{0}', space=sflag, size = 0x8, scoped, tag = 'scoped memory for tpu_custom_call.1']
    %7 = vsyncpa [#allocation3], 0
    %s8 = scalar_lea.sflag [#allocation3], 1
    %9 = vsyncpa %s8, 0
    loop: start=0, step=1, limit=4
    $region2: #{tpu_custom_call.1} parent=1 // loop_pre_header
      _
    $region3: #{tpu_custom_call.1} parent=1 // loop_header
      %s11 = sphi 0, %s15
      %p12 = scmp.ge.s32.totalorder %s11, 4
      %s18 = sphi 0, %s37
      %s19 = sphi 0, %s33
      %s20 = sphi 0, %s29
      %s21 = sphi 0, %s18
      %s22 = sphi 0, %s19
      %s23 = sphi 0, %s20
      %s24 = sphi 0, %s21
      %s25 = sphi 0, %s22
      %s26 = sphi 0, %s23
      %s42 = sphi 0, %s44
      %s45 = sphi 0, %s42
      %s46 = sphi 0, %s45
      %s62 = sphi 0, %s46
      %s70 = sphi 0, %s72
      %s73 = sphi 0, %s70
      %s74 = sphi 0, %s73
      %s90 = sphi 0, %s74
      %s100 = sphi 0, %s102
      %s103 = sphi 0, %s100
      %s104 = sphi 0, %s103
      %s120 = sphi 0, %s104
    $region4: #{tpu_custom_call.1} parent=1 // loop_header_branch
      %14 = sbr.rel (%p12) target = $region8
    $region5: #{tpu_custom_call.1} parent=1 // loop_body
      %s16 = ssub.s32 %s11, 1
      %s17 = ssub.s32 %s11, 2
      %s27 = sadd.s32 1, %s20
      %p28 = scmp.ge.s32.totalorder %s27, 1
      %s29 = scalar_select %p28, 0, %s27
      %s30 = sadd.s32 1, %s19
      %s31 = scalar_select %p28, %s30, %s19
      %p32 = scmp.ge.s32.totalorder %s31, 1
      %s33 = scalar_select %p32, 0, %s31
      %s34 = sadd.s32 1, %s18
      %s35 = scalar_select %p32, %s34, %s18
      %p36 = scmp.ge.s32.totalorder %s35, 2
      %s37 = scalar_select %p36, 0, %s35
      %s38 = ssub.s32 %s18, %s37
      %s39 = ssub.s32 %s19, %s33
      %s40 = sor.u32 %s38, %s39
      %p41 = scmp.eq.s32.totalorder %s40, 0
      %s43 = sadd.s32 %s42, 1
      %s44 = scalar_select %p41, %s42, %s43
      %p47 = pneg %p41
      %p48 = scmp.eq.s32.totalorder %s11, 1
      %p49 = por %p47, %p48
      %p50 = scmp.ne.s32.totalorder %s42, %s45
      %p51 = scmp.eq.s32.totalorder %s11, 0
      %p52 = por %p50, %p51
      %p53 = scmp.ne.s32.totalorder %s42, %s45
      %p54 = scmp.eq.s32.totalorder %s16, 1
      %p55 = por %p53, %p54
      %p56 = scmp.ne.s32.totalorder %s45, %s46
      %p57 = scmp.eq.s32.totalorder %s16, 0
      %p58 = por %p56, %p57
      %p59 = scmp.ne.s32.totalorder %s45, %s46
      %p60 = scmp.eq.s32.totalorder %s17, 1
      %p61 = por %p59, %p60
      %p63 = scmp.ne.s32.totalorder %s46, %s62
      %p64 = scmp.eq.s32.totalorder %s17, 0
      %p65 = por %p63, %p64
      %s66 = ssub.s32 %s18, %s37
      %s67 = ssub.s32 %s20, %s29
      %s68 = sor.u32 %s66, %s67
      %p69 = scmp.eq.s32.totalorder %s68, 0
      %s71 = sadd.s32 %s70, 1
      %s72 = scalar_select %p69, %s70, %s71
      %p75 = pneg %p69
      %p76 = scmp.eq.s32.totalorder %s11, 1
      %p77 = por %p75, %p76
      %p78 = scmp.ne.s32.totalorder %s70, %s73
      %p79 = scmp.eq.s32.totalorder %s11, 0
      %p80 = por %p78, %p79
      %p81 = scmp.ne.s32.totalorder %s70, %s73
      %p82 = scmp.eq.s32.totalorder %s16, 1
      %p83 = por %p81, %p82
      %p84 = scmp.ne.s32.totalorder %s73, %s74
      %p85 = scmp.eq.s32.totalorder %s16, 0
      %p86 = por %p84, %p85
      %p87 = scmp.ne.s32.totalorder %s73, %s74
      %p88 = scmp.eq.s32.totalorder %s17, 1
      %p89 = por %p87, %p88
      %p91 = scmp.ne.s32.totalorder %s74, %s90
      %p92 = scmp.eq.s32.totalorder %s17, 0
      %p93 = por %p91, %p92
      %s94 = ssub.s32 %s18, %s37
      %s95 = ssub.s32 %s19, %s33
      %s96 = sor.u32 %s94, %s95
      %s97 = ssub.s32 %s20, %s29
      %s98 = sor.u32 %s96, %s97
      %p99 = scmp.eq.s32.totalorder %s98, 0
      %s101 = sadd.s32 %s100, 1
      %s102 = scalar_select %p99, %s100, %s101
      %p105 = pneg %p99
      %p106 = scmp.eq.s32.totalorder %s11, 1
      %p107 = por %p105, %p106
      %p108 = scmp.ne.s32.totalorder %s100, %s103
      %p109 = scmp.eq.s32.totalorder %s11, 0
      %p110 = por %p108, %p109
      %p111 = scmp.ne.s32.totalorder %s100, %s103
      %p112 = scmp.eq.s32.totalorder %s16, 1
      %p113 = por %p111, %p112
      %p114 = scmp.ne.s32.totalorder %s103, %s104
      %p115 = scmp.eq.s32.totalorder %s16, 0
      %p116 = por %p114, %p115
      %p117 = scmp.ne.s32.totalorder %s103, %s104
      %p118 = scmp.eq.s32.totalorder %s17, 1
      %p119 = por %p117, %p118
      %p121 = scmp.ne.s32.totalorder %s104, %s120
      %p122 = scmp.eq.s32.totalorder %s17, 0
      %p123 = por %p121, %p122
      %p124 = scmp.le.s32.totalorder 1, %s11
      %p125 = scmp.lt.s32.totalorder %s11, 3
      %p126 = pnand %p124, %p125
      %p127 = pneg %p126
      // Predicated region
      $region9: #{tpu_custom_call.1} parent=5 // pred_check
        _
      $region10: #{tpu_custom_call.1} parent=5 // pred_check_branch
        %129 = sbr.rel (%p126) target = $region12
      $region11: #{tpu_custom_call.1} parent=5 // pred_region
        %s130 = ssub.s32 %s11, 1
      $region12: #{tpu_custom_call.1} parent=5 // pred_fallthru
        _
      %p131 = scmp.lt.s32.totalorder %s11, 2
      // Predicated region
      $region13: #{tpu_custom_call.1} parent=5 // pred_check
        %p132 = pneg %p131
      $region14: #{tpu_custom_call.1} parent=5 // pred_check_branch
        %134 = sbr.rel (%p132) target = $region16
      $region15: #{tpu_custom_call.1} parent=5 // pred_region
        // Predicated region
        $region17: #{tpu_custom_call.1} parent=15 // pred_check
          %p135 = pneg %p52
        $region18: #{tpu_custom_call.1} parent=15 // pred_check_branch
          %137 = sbr.rel (%p135) target = $region20
        $region19: #{tpu_custom_call.1} parent=15 // pred_region
          %s138 = smul.u32 4, %s19
          %p139 = scmp.lt.s32.totalorder %s18, 1
          %s140 = scalar_select %p139, %s18, 1
          %p141 = scmp.lt.s32.totalorder %s138, 3
          %s142 = scalar_select %p141, %s138, 3
          %s143 = smul.addr %s140, 4
          %s144 = sadd.s32 %s142, %s143
          %s145 = smul.addr %s144, 8
          %s146 = scalar_lea.vmem %s0, %s145
          %s147 = smul.u32 4, %s19
        $region20: #{tpu_custom_call.1} parent=15 // pred_fallthru
          _
        // Predicated region
        $region21: #{tpu_custom_call.1} parent=15 // pred_check
          %p148 = pneg %p80
        $region22: #{tpu_custom_call.1} parent=15 // pred_check_branch
          %150 = sbr.rel (%p148) target = $region24
        $region23: #{tpu_custom_call.1} parent=15 // pred_region
          %p151 = scmp.lt.s32.totalorder %s18, 1
          %s152 = scalar_select %p151, %s18, 1
          %p153 = scmp.lt.s32.totalorder %s20, 0
          %s154 = scalar_select %p153, %s20, 0
          %s155 = sadd.s32 %s154, %s152
          %s156 = smul.addr %s155, 8
          %s157 = scalar_lea.vmem %s1, %s156
        $region24: #{tpu_custom_call.1} parent=15 // pred_fallthru
          _
      $region16: #{tpu_custom_call.1} parent=5 // pred_fallthru
        _
      %p158 = scmp.le.s32.totalorder 1, %s11
      %p159 = scmp.lt.s32.totalorder %s11, 3
      %p160 = pnand %p158, %p159
      %p161 = pneg %p160
      // Predicated region
      $region25: #{tpu_custom_call.1} parent=5 // pred_check
        _
      $region26: #{tpu_custom_call.1} parent=5 // pred_check_branch
        %163 = sbr.rel (%p160) target = $region28
      $region27: #{tpu_custom_call.1} parent=5 // pred_region
        %s164 = ssub.s32 %s11, 1
        %s165 = smul.u32 4, %s22
        %p166 = scmp.lt.s32.totalorder %s21, 1
        %s167 = scalar_select %p166, %s21, 1
        %p168 = scmp.lt.s32.totalorder %s165, 3
        %s169 = scalar_select %p168, %s165, 3
        %s170 = smul.addr %s167, 4
        %s171 = sadd.s32 %s169, %s170
        %s172 = smul.addr %s171, 8
        %s173 = scalar_lea.vmem %s0, %s172
        %p174 = pneg %p58
        %p175 = pneg %p55
        %p176 = scmp.lt.s32.totalorder %s21, 1
        %s177 = scalar_select %p176, %s21, 1
        %p178 = scmp.lt.s32.totalorder %s23, 0
        %s179 = scalar_select %p178, %s23, 0
        %s180 = sadd.s32 %s179, %s177
        %s181 = smul.addr %s180, 8
        %s182 = scalar_lea.vmem %s1, %s181
        %p183 = pneg %p86
        %p184 = pneg %p83
        %p185 = pneg %p116
        %p186 = pneg %p113
        %s187 = sand.u32 %s103, 1
        %s188 = scalar_lea.sflag [#allocation3], %s187
        %s189 = sand.u32 %s103, 1
        %s190 = smul.addr %s189, 32
        %s191 = scalar_lea.vmem [#allocation2], %s190
        %s192 = smul.u32 4, %s22
        %p193 = scmp.lt.s32.totalorder %s21, 1
        %s194 = scalar_select %p193, %s21, 1
        %p195 = scmp.lt.s32.totalorder %s192, 3
        %s196 = scalar_select %p195, %s192, 3
        %s197 = smul.addr %s194, 4
        %s198 = sadd.s32 %s196, %s197
        %s199 = smul.addr %s198, 8
        %s200 = scalar_lea.vmem %s0, %s199
        %s201 = smul.u32 4, %s22
        %p202 = scmp.lt.s32.totalorder %s21, 1
        %s203 = scalar_select %p202, %s21, 1
        %p204 = scmp.lt.s32.totalorder %s23, 0
        %s205 = scalar_select %p204, %s23, 0
        %s206 = sadd.s32 %s205, %s203
        %s207 = smul.addr %s206, 8
        %s208 = scalar_lea.vmem %s1, %s207
        %s209 = smul.u32 4, %s22
        %v210 = vld [vmem:[%s200] sm:$0xff]
        %v211 = vld [vmem:[%s200 + $0x8] sm:$0xff]
        %v212 = vld [vmem:[%s200 + $0x10] sm:$0xff]
        %v213 = vld [vmem:[%s200 + $0x18] sm:$0xff]
        %v214 = vld [vmem:[%s208] sm:$0xff]
        %vm215 = vcmask 64512
        %v217 = vsel %vm215, %v210, 0
        %v220 = vsel %vm215, %v211, 0
        %v223 = vsel %vm215, %v212, 0
        %v226 = vsel %vm215, %v213, 0
        %228 = vmatprep.subr.mxu0 0.0
        %229 = vmatpush1.msra.mxu0 0.0
        %230 = vmatprep.subr.mxu0 0.0
        %231 = vmatpush1.msra.mxu0 0.0
        %232 = vmatprep.subr.mxu0 0.0
        %233 = vmatpush1.msra.mxu0 0.0
        %234 = vmatprep.subr.mxu0 0.0
        %235 = vmatpush1.msra.mxu0 0.0
        %236 = vmatprep.subr.mxu0 0.0
        %237 = vmatpush1.msra.mxu0 0.0
        %238 = vmatprep.subr.mxu0 0.0
        %239 = vmatpush1.msra.mxu0 0.0
        %240 = vmatprep.subr.mxu0 0.0
        %241 = vmatpush1.msra.mxu0 0.0
        %242 = vmatprep.subr.mxu0 0.0
        %243 = vmatpush1.msra.mxu0 0.0
        %244 = vmatprep.subr.mxu0 0.0
        %245 = vmatpush1.msra.mxu0 0.0
        %246 = vmatprep.subr.mxu0 0.0
        %247 = vmatpush1.msra.mxu0 0.0
        %248 = vmatprep.subr.mxu0 0.0
        %249 = vmatpush1.msra.mxu0 0.0
        %250 = vmatprep.subr.mxu0 0.0
        %251 = vmatpush1.msra.mxu0 0.0
        %252 = vmatprep.subr.mxu0 0.0
        %253 = vmatpush1.msra.mxu0 0.0
        %254 = vmatprep.subr.mxu0 0.0
        %255 = vmatpush1.msra.mxu0 0.0
        %256 = vmatprep.subr.mxu0 0.0
        %257 = vmatpush1.msra.mxu0 0.0
        %258 = vmatprep.subr.mxu0 0.0
        %259 = vmatpush1.msra.mxu0 %v214
        %260 = vmatprep.subr.mxu0 0.0
        %261 = vmatpush2.msra.mxu0 0.0
        %262 = vmatprep.subr.mxu0 0.0
        %263 = vmatpush2.msra.mxu0 0.0
        %264 = vmatprep.subr.mxu0 0.0
        %265 = vmatpush2.msra.mxu0 0.0
        %266 = vmatprep.subr.mxu0 0.0
        %267 = vmatpush2.msra.mxu0 0.0
        %268 = vmatprep.subr.mxu0 0.0
        %269 = vmatpush2.msra.mxu0 0.0
        %270 = vmatprep.subr.mxu0 0.0
        %271 = vmatpush2.msra.mxu0 0.0
        %272 = vmatprep.subr.mxu0 0.0
        %273 = vmatpush2.msra.mxu0 0.0
        %274 = vmatprep.subr.mxu0 0.0
        %275 = vmatpush2.msra.mxu0 0.0
        %276 = vmatprep.subr.mxu0 0.0
        %277 = vmatpush2.msra.mxu0 0.0
        %278 = vmatprep.subr.mxu0 0.0
        %279 = vmatpush2.msra.mxu0 0.0
        %280 = vmatprep.subr.mxu0 0.0
        %281 = vmatpush2.msra.mxu0 0.0
        %282 = vmatprep.subr.mxu0 0.0
        %283 = vmatpush2.msra.mxu0 0.0
        %284 = vmatprep.subr.mxu0 0.0
        %285 = vmatpush2.msra.mxu0 0.0
        %286 = vmatprep.subr.mxu0 0.0
        %287 = vmatpush2.msra.mxu0 0.0
        %288 = vmatprep.subr.mxu0 0.0
        %289 = vmatpush2.msra.mxu0 0.0
        %290 = vmatprep.subr.mxu0 0.0
        %291 = vmatpush2.msra.mxu0 0.0
        %292 = vmatprep.mubr.f32.mxu0 0.0
        %293 = vmatmul.mubr.f32.gmra.mxu0 %v217
        %v294 = vpop.f32.mrf.mxu0
        %v295 = vadd.f32 0.0, %v294
        %v296 = vpop.f32.mrf.mxu0
        %297 = vmatprep.mubr.f32.mxu0 0.0
        %298 = vmatmul.mubr.f32.gmra.mxu0 %v220
        %v299 = vpop.f32.mrf.mxu0
        %v300 = vadd.f32 0.0, %v299
        %v301 = vpop.f32.mrf.mxu0
        %302 = vmatprep.mubr.f32.mxu0 0.0
        %303 = vmatmul.mubr.f32.gmra.mxu0 %v223
        %v304 = vpop.f32.mrf.mxu0
        %v305 = vadd.f32 0.0, %v304
        %v306 = vpop.f32.mrf.mxu0
        %307 = vmatprep.mubr.f32.mxu0 0.0
        %308 = vmatmul.mubr.f32.gmra.mxu0 %v226
        %v309 = vpop.f32.mrf.mxu0
        %v310 = vadd.f32 0.0, %v309
        %v311 = vpop.f32.mrf.mxu0
        %312 = vdwg.mxu0
        %v313 = vmul.f32 %v295, 0.03125
        %v314 = vmul.f32 %v300, 0.03125
        %v315 = vmul.f32 %v305, 0.03125
        %v316 = vmul.f32 %v310, 0.03125
        %vm317 = vcmask 261120
        %318 = vst.msk [vmem:[%s191] sm:$0xff] %vm317, %v313
        %319 = vst.msk [vmem:[%s191 + $0x8] sm:$0xff] %vm317, %v314
        %320 = vst.msk [vmem:[%s191 + $0x10] sm:$0xff] %vm317, %v315
        %321 = vst.msk [vmem:[%s191 + $0x18] sm:$0xff] %vm317, %v316
        %s322 = sand.u32 %s103, 1
        %s323 = scalar_lea.sflag [#allocation3], %s322
        %s324 = sand.u32 %s103, 1
        %s325 = smul.addr %s324, 32
        %s326 = scalar_lea.vmem [#allocation2], %s325
        // Predicated region
        $region29: #{tpu_custom_call.1} parent=27 // pred_check
          %p327 = pneg %p113
        $region30: #{tpu_custom_call.1} parent=27 // pred_check_branch
          %329 = sbr.rel (%p327) target = $region32
        $region31: #{tpu_custom_call.1} parent=27 // pred_region
          %s330 = smul.u32 4, %s22
          %s332 = ssub.s32 512, 512
          %333 = vsyncadd %s323, %s332
          %s334 = sadd.s32 %s23, %s330
          %s335 = smul.addr %s21, 4
          %s336 = sadd.s32 %s334, %s335
          %s337 = smul.addr %s336, 128
          %s338 = scalar_lea.hbm %s2, %s337
          %s339 = sshll.u32 %s326, 4
          %s340 = int_to_ptr.vmem [resolvable:$true] %s339
          %345 = dma.vmem_to_hbm [thread:$0]  %s340, 512, %s338, %s323, 128, 128, 8
        $region32: #{tpu_custom_call.1} parent=27 // pred_fallthru
          _
      $region28: #{tpu_custom_call.1} parent=5 // pred_fallthru
        _
      %p346 = scmp.le.s32.totalorder 2, %s11
      // Predicated region
      $region33: #{tpu_custom_call.1} parent=5 // pred_check
        %p347 = pneg %p346
      $region34: #{tpu_custom_call.1} parent=5 // pred_check_branch
        %349 = sbr.rel (%p347) target = $region36
      $region35: #{tpu_custom_call.1} parent=5 // pred_region
        %s350 = ssub.s32 %s11, 2
        // Predicated region
        $region37: #{tpu_custom_call.1} parent=35 // pred_check
          %p351 = pneg %p119
        $region38: #{tpu_custom_call.1} parent=35 // pred_check_branch
          %353 = sbr.rel (%p351) target = $region40
        $region39: #{tpu_custom_call.1} parent=35 // pred_region
          %s354 = sand.u32 %s104, 1
          %s355 = scalar_lea.sflag [#allocation3], %s354
          %s356 = sand.u32 %s104, 1
          %s357 = smul.addr %s356, 32
          %s358 = scalar_lea.vmem [#allocation2], %s357
          %359 = dma.done %s355, 512
        $region40: #{tpu_custom_call.1} parent=35 // pred_fallthru
          _
      $region36: #{tpu_custom_call.1} parent=5 // pred_fallthru
        _
    $region6: #{tpu_custom_call.1} parent=1 // loop_footer
      %s15 = sadd.s32 1, %s11
    $region7: #{tpu_custom_call.1} parent=1 // loop_footer_branch
      %10 = sbr.rel target = $region3
    $region8: #{tpu_custom_call.1} parent=1 // loop_exit
      _
    %360 = vsyncpa [#allocation3], 1
    %s361 = scalar_lea.sflag [#allocation3], 1
    %362 = vsyncpa %s361, 1

</llo_original>
